<compile_context>
chip_gen: v6e
topology: v6e:2x2x1
jax: 0.10.0
libtpu: 0.0.40
codegen_flags: <defaults>
</compile_context>

<pallas_src>
import functools

import jax
import jax.numpy as jnp
import numpy as np
from jax.experimental import pallas as pl
from jax.experimental.pallas import tpu as pltpu

TAU = 5.0
LAMBDA_POS = 1.0
LAMBDA_VR = 0.01
GAMMA_STFT = 1.0
L = int(6 * TAU)      # 30  (van Rossum kernel length)
PAD = L // 2          # 15  (conv1d padding)
HEAD = 16             # halo rows carried / looked-ahead (>= PAD and >= L-1-PAD)

assert PAD <= HEAD and (L - 1 - PAD) <= HEAD


def _rowsum8(x):
    """Sum rows of [R, N] in groups of 8 -> [8, N] (R % 8 == 0). VPU adds only."""
    r = x.shape[0]
    acc = x[0:8, :]
    for g in range(1, r // 8):
        acc = acc + x[g * 8:(g + 1) * 8, :]
    return acc


def _spike_loss_kernel(w_ref, p_ref, t_ref, pn_ref, tn_ref, m_ref,
                       out_ref, win_ref, *, tile_t, blk):
    ti = pl.program_id(1)                    # T-tile index (carry / accumulate axis)
    chunk = win_ref.shape[1]

    @pl.when(ti == 0)
    def _init():
        out_ref[...] = jnp.zeros_like(out_ref)
        win_ref[0:HEAD, :] = jnp.zeros((HEAD, chunk), jnp.bfloat16)

    @pl.when(ti > 0)
    def _carry():
        # previous tile's d tail -> this tile's left halo
        win_ref[0:HEAD, :] = win_ref[tile_t:tile_t + HEAD, :]

    # ---- masked binary cross entropy (F.binary_cross_entropy clamps log at -100) ----
    p32 = p_ref[...].astype(jnp.float32)
    t32 = t_ref[...].astype(jnp.float32)
    m32 = m_ref[...].astype(jnp.float32)                       # int8 -> f32
    logp = jnp.maximum(jnp.log(p32), -100.0)
    log1mp = jnp.maximum(jnp.log(1.0 - p32), -100.0)
    bce = -(t32 * logp + (1.0 - t32) * log1mp)

    acc = out_ref[0] + _rowsum8(LAMBDA_POS * bce * m32)        # (8, chunk) f32

    # ---- van Rossum: filter (pred - target) once (linearity), band matmul ----
    # window rows s map to global time ti*tile_t - HEAD + s
    win_ref[HEAD:HEAD + tile_t, :] = (p32 - t32).astype(jnp.bfloat16)
    win_ref[HEAD + tile_t:, :] = (pn_ref[...] - tn_ref[...]).astype(jnp.bfloat16)

    w = w_ref[...]                                             # (blk, blk+2*HEAD) bf16
    for j in range(tile_t // blk):
        win_j = win_ref[j * blk: j * blk + blk + 2 * HEAD, :]  # shifted window slice
        filt = jnp.dot(w, win_j, preferred_element_type=jnp.float32)
        mj = m32[j * blk:(j + 1) * blk, :]
        acc = acc + _rowsum8(LAMBDA_VR * (filt * filt) * mj)

    out_ref[0] = acc


def spike_position_loss(pred, target, mask, *, tile_t=None, chunk=None):
    """pred, target: [B, T, C]; mask: [B, T] (0/1). Returns scalar f32 loss.

    Note: an all-zero mask yields NaN (division by zero element count), matching
    the PyTorch original.
    """
    B, T, C = pred.shape
    in_dtype = jnp.bfloat16 if pred.dtype == jnp.bfloat16 else jnp.float32
    bpe = 2 if in_dtype == jnp.bfloat16 else 4

    BC = B * C
    BC_pad = ((BC + 127) // 128) * 128

    # ---- lane chunking (outer "parallel" grid axis; lets v7x use both TCs) ----
    if chunk is None:
        chunk = 512 if BC_pad % 512 == 0 else (256 if BC_pad % 256 == 0 else 128)
    assert chunk % 128 == 0 and BC_pad % chunk == 0
    n_chunks = BC_pad // chunk

    # ---- tile size: count input double-buffers, int8 mask, bf16 window scratch
    #      AND the f32 elementwise temporaries (review: "honest" VMEM budget). ----
    if tile_t is None:
        budget = 12 * 1024 * 1024
        per_row = chunk * (2 * 2 * bpe + 2 * 1 + 2 + 8 * 4)
        raw = max(32, budget // per_row)
        tile_t = min(512, (raw // 128) * 128) if raw >= 128 else max(32, (raw // 32) * 32)
        t_cap = ((T + 31) // 32) * 32
        tile_t = max(32, min(tile_t, t_cap))
    assert tile_t >= 32 and tile_t % 32 == 0

    # matmul output row block (MXU-friendly); band block is shift-invariant.
    blk = next(b for b in (256, 128, 64, 32) if tile_t % b == 0)

    nT = (T + tile_t - 1) // tile_t
    T_cur = nT * tile_t
    T_tot = T_cur + HEAD                  # room for the final 16-row look-ahead block

    # ---- lane-dense slabs: [T, B*C], zero padded (matches conv1d zero pad) ----
    # TODO(synk): producing [T, B*C] directly from the upstream producer (instead of
    #             this transpose/pad pass) would remove an extra HBM round trip.
    x = jnp.transpose(pred.astype(in_dtype), (1, 0, 2)).reshape(T, BC)
    y = jnp.transpose(target.astype(in_dtype), (1, 0, 2)).reshape(T, BC)
    x = jnp.pad(x, ((0, T_tot - T), (0, BC_pad - BC)))
    y = jnp.pad(y, ((0, T_tot - T), (0, BC_pad - BC)))
    m8 = jnp.repeat(mask.astype(jnp.int8).T, C, axis=1)                 # [T, B*C] int8
    m8 = jnp.pad(m8, ((0, T_cur - T), (0, BC_pad - BC)))

    # masked element count computed once here (not per-step in the kernel)
    count = jnp.sum(mask.astype(jnp.float32)) * C

    # ---- small constant band block W[r, s] = ker[s - r - 1] (bf16) ----
    r = np.arange(blk, dtype=np.int64)[:, None]
    s = np.arange(blk + 2 * HEAD, dtype=np.int64)[None, :]
    k_idx = s - r - 1
    wband = np.where((k_idx >= 0) & (k_idx < L),
                     np.exp(-np.clip(k_idx, 0, None).astype(np.float64) / TAU),
                     0.0).astype(np.float32)
    w = jnp.asarray(wband, dtype=jnp.bfloat16)

    # ---- explicit VMEM budget (double-buffered inputs + scratch + f32 temps) ----
    est = (4 * tile_t * chunk * bpe            # pred/target current tiles (x2 buffers)
           + 4 * HEAD * chunk * bpe            # look-ahead blocks (x2 buffers)
           + 2 * tile_t * chunk * 1            # int8 mask (x2 buffers)
           + 2 * blk * (blk + 2 * HEAD) * 2    # W band (x2 buffers)
           + (tile_t + 2 * HEAD) * chunk * 2   # bf16 window scratch
           + 2 * 8 * chunk * 4                 # output accumulator block
           + 8 * tile_t * chunk * 4)           # f32 elementwise temporaries (heuristic)
    vmem_limit = int(min(max(2 * est, 24 << 20), 48 << 20))

    blk_cur = pl.BlockSpec((tile_t, chunk), lambda c, t: (t, c))
    head_blocks = tile_t // HEAD
    blk_head = pl.BlockSpec((HEAD, chunk), lambda c, t: ((t + 1) * head_blocks, c))

    partials = pl.pallas_call(
        functools.partial(_spike_loss_kernel, tile_t=tile_t, blk=blk),
        out_shape=jax.ShapeDtypeStruct((n_chunks, 8, chunk), jnp.float32),
        grid=(n_chunks, nT),
        in_specs=[
            pl.BlockSpec((blk, blk + 2 * HEAD), lambda c, t: (0, 0)),   # W band block
            blk_cur,    # pred   (current tile)
            blk_cur,    # target (current tile)
            blk_head,   # pred   (16-row look-ahead of next tile)
            blk_head,   # target (16-row look-ahead of next tile)
            blk_cur,    # mask   (int8, expanded over C lanes)
        ],
        out_specs=pl.BlockSpec((1, 8, chunk), lambda c, t: (c, 0, 0)),
        scratch_shapes=[
            pltpu.VMEM((tile_t + 2 * HEAD, chunk), jnp.bfloat16),   # filter window + halo carry
        ],
        compiler_params=pltpu.CompilerParams(
            dimension_semantics=("parallel", "arbitrary"),
            vmem_limit_bytes=vmem_limit),
    )(w, x, y, x, y, m8)

    # loss = (lambda_pos * sum(bce*m) + lambda_vr * sum(filt^2*m)) / count
    return (jnp.sum(partials) / count).astype(jnp.float32)


def _reference_loss(pred, target, mask):
    """Pure numpy reference mirroring the PyTorch forward (minus the stft term)."""
    pred = np.asarray(pred, dtype=np.float64)
    target = np.asarray(target, dtype=np.float64)
    mask = np.asarray(mask, dtype=np.float64)
    B, T, C = pred.shape
    ker = np.exp(-np.arange(L, dtype=np.float64) / TAU)
    m3 = mask[:, :, None]

    logp = np.maximum(np.log(pred), -100.0)
    log1mp = np.maximum(np.log(1.0 - pred), -100.0)
    bce = -(target * logp + (1.0 - target) * log1mp)
    count = mask.sum() * C
    pos_loss = (bce * m3).sum() / count

    pad_l, pad_r = PAD, L - 1 - PAD
    pp = np.pad(pred, ((0, 0), (pad_l, pad_r), (0, 0)))
    tp = np.pad(target, ((0, 0), (pad_l, pad_r), (0, 0)))
    p_f = np.zeros_like(pred)
    t_f = np.zeros_like(target)
    for k in range(L):
        p_f += ker[k] * pp[:, k:k + T, :]
        t_f += ker[k] * tp[:, k:k + T, :]
    vr_loss = (((p_f - t_f) ** 2) * m3).sum() / count

    return LAMBDA_POS * pos_loss + LAMBDA_VR * vr_loss


if __name__ == "__main__":
    key = jax.random.PRNGKey(0)
    k1, k2, k3, k4, k5, k6 = jax.random.split(key, 6)

    # Case 1: small single-tile shapes (B, T, C = 2, 16, 4), default tiling.
    B, T, C = 2, 16, 4
    pred = jax.nn.sigmoid(jax.random.normal(k1, (B, T, C), jnp.float32))
    target = (jax.random.uniform(k2, (B, T, C)) < 0.3).astype(jnp.float32)
    mask = ((jnp.arange(T)[None, :] < 12).astype(jnp.float32)
            * jnp.ones((B, 1), jnp.float32))
    loss = jax.block_until_ready(spike_position_loss(pred, target, mask))
    ref = _reference_loss(pred, target, mask)
    assert np.allclose(float(loss), float(ref), rtol=2e-3, atol=1e-5), \
        (float(loss), float(ref))

    # Case 2: multi-tile path exercising the halo carry / look-ahead (T=80, tile_t=32).
    B2, T2, C2 = 2, 80, 4
    pred2 = jax.nn.sigmoid(jax.random.normal(k3, (B2, T2, C2), jnp.float32))
    target2 = (jax.random.uniform(k4, (B2, T2, C2)) < 0.3).astype(jnp.float32)
    t_real2 = jnp.array([[70], [45]], jnp.int32)
    mask2 = (jnp.arange(T2)[None, :] < t_real2).astype(jnp.float32)
    loss2 = jax.block_until_ready(
        spike_position_loss(pred2, target2, mask2, tile_t=32))
    ref2 = _reference_loss(pred2, target2, mask2)
    assert np.allclose(float(loss2), float(ref2), rtol=2e-3, atol=1e-5), \
        (float(loss2), float(ref2))

    # Case 3: multi-chunk (parallel lane axis) + multi-tile (B*C=192 -> 2 chunks of 128).
    B3, T3, C3 = 2, 64, 96
    pred3 = jax.nn.sigmoid(jax.random.normal(k5, (B3, T3, C3), jnp.float32))
    target3 = (jax.random.uniform(k6, (B3, T3, C3)) < 0.3).astype(jnp.float32)
    t_real3 = jnp.array([[50], [33]], jnp.int32)
    mask3 = (jnp.arange(T3)[None, :] < t_real3).astype(jnp.float32)
    loss3 = jax.block_until_ready(
        spike_position_loss(pred3, target3, mask3, tile_t=32, chunk=128))
    ref3 = _reference_loss(pred3, target3, mask3)
    assert np.allclose(float(loss3), float(ref3), rtol=2e-3, atol=1e-5), \
        (float(loss3), float(ref3))

    print("KERNEL_OK")
</pallas_src>

<mosaic_0001>
module attributes {stable_mosaic.version = 11 : i64} {
  func.func @_spike_loss_kernel(%arg0: i32, %arg1: i32, %arg2: memref<32x64xbf16, #tpu.memory_space<vmem>>, %arg3: memref<32x128xf32, #tpu.memory_space<vmem>>, %arg4: memref<32x128xf32, #tpu.memory_space<vmem>>, %arg5: memref<16x128xf32, #tpu.memory_space<vmem>>, %arg6: memref<16x128xf32, #tpu.memory_space<vmem>>, %arg7: memref<32x128xi8, #tpu.memory_space<vmem>>, %arg8: memref<1x8x128xf32, #tpu.memory_space<vmem>>, %arg9: memref<64x128xbf16, #tpu.memory_space<vmem>>) attributes {dimension_semantics = [#tpu.dimension_semantics<parallel>, #tpu.dimension_semantics<arbitrary>], iteration_bounds = array<i64: 1, 1>, scalar_prefetch = 0 : i64, scratch_operands = 1 : i64, tpu.core_type = #tpu.core_type<tc>, window_params = [{pipeline_mode = #tpu.pipeline_mode<synchronous>, transform_indices = @transform_0, window_bounds = array<i64: 32, 64>}, {transform_indices = @transform_1, window_bounds = array<i64: 32, 128>}, {transform_indices = @transform_2, window_bounds = array<i64: 32, 128>}, {transform_indices = @transform_3, window_bounds = array<i64: 16, 128>}, {transform_indices = @transform_4, window_bounds = array<i64: 16, 128>}, {transform_indices = @transform_5, window_bounds = array<i64: 32, 128>}, {transform_indices = @transform_6, window_bounds = array<i64: 1, 8, 128>}]} {
    %c0_i32 = arith.constant 0 : i32
    %0 = arith.cmpi eq, %arg1, %c0_i32 : i32
    %1 = arith.extui %0 : i1 to i32
    %c0_i32_0 = arith.constant 0 : i32
    %2 = arith.cmpi ne, %1, %c0_i32_0 : i32
    scf.if %2 {
      %cst_31 = arith.constant 0.000000e+00 : f32
      %64 = vector.broadcast %cst_31 : f32 to vector<1x8x128xf32>
      %c0_32 = arith.constant 0 : index
      %c0_33 = arith.constant 0 : index
      %c0_34 = arith.constant 0 : index
      %65 = vector.load %arg8[%c0_32, %c0_33, %c0_34] : memref<1x8x128xf32, #tpu.memory_space<vmem>>, vector<1x8x128xf32>
      tpu.vector_store %arg8[%c0_32, %c0_33, %c0_34], %64 {strides = array<i32>} : memref<1x8x128xf32, #tpu.memory_space<vmem>>, vector<1x8x128xf32>,
      %cst_35 = arith.constant 0.000000e+00 : bf16
      %66 = vector.broadcast %cst_35 : bf16 to vector<16x128xbf16>
      %c0_36 = arith.constant 0 : index
      %c0_37 = arith.constant 0 : index
      %67 = vector.load %arg9[%c0_36, %c0_37] : memref<64x128xbf16, #tpu.memory_space<vmem>>, vector<16x128xbf16>
      tpu.vector_store %arg9[%c0_36, %c0_37], %66 {strides = array<i32>} : memref<64x128xbf16, #tpu.memory_space<vmem>>, vector<16x128xbf16>,
    } else {
    }
    %c0_i32_1 = arith.constant 0 : i32
    %3 = arith.cmpi sgt, %arg1, %c0_i32_1 : i32
    %4 = arith.extui %3 : i1 to i32
    %c0_i32_2 = arith.constant 0 : i32
    %5 = arith.cmpi ne, %4, %c0_i32_2 : i32
    scf.if %5 {
      %c32 = arith.constant 32 : index
      %c0_31 = arith.constant 0 : index
      %64 = vector.load %arg9[%c32, %c0_31] : memref<64x128xbf16, #tpu.memory_space<vmem>>, vector<16x128xbf16>
      %c0_32 = arith.constant 0 : index
      %c0_33 = arith.constant 0 : index
      %65 = vector.load %arg9[%c0_32, %c0_33] : memref<64x128xbf16, #tpu.memory_space<vmem>>, vector<16x128xbf16>
      tpu.vector_store %arg9[%c0_32, %c0_33], %64 {strides = array<i32>} : memref<64x128xbf16, #tpu.memory_space<vmem>>, vector<16x128xbf16>,
    } else {
    }
    %c0 = arith.constant 0 : index
    %c0_3 = arith.constant 0 : index
    %6 = vector.load %arg3[%c0, %c0_3] : memref<32x128xf32, #tpu.memory_space<vmem>>, vector<32x128xf32>
    %c0_4 = arith.constant 0 : index
    %c0_5 = arith.constant 0 : index
    %7 = vector.load %arg4[%c0_4, %c0_5] : memref<32x128xf32, #tpu.memory_space<vmem>>, vector<32x128xf32>
    %c0_6 = arith.constant 0 : index
    %c0_7 = arith.constant 0 : index
    %8 = vector.load %arg7[%c0_6, %c0_7] : memref<32x128xi8, #tpu.memory_space<vmem>>, vector<32x128xi8>
    %9 = arith.sitofp %8 : vector<32x128xi8> to vector<32x128xf32>
    %10 = math.log %6 : vector<32x128xf32>
    %cst = arith.constant -1.000000e+02 : f32
    %11 = vector.broadcast %cst : f32 to vector<32x128xf32>
    %12 = arith.maximumf %10, %11 : vector<32x128xf32>
    %cst_8 = arith.constant 1.000000e+00 : f32
    %13 = vector.broadcast %cst_8 : f32 to vector<32x128xf32>
    %14 = arith.subf %13, %6 : vector<32x128xf32>
    %15 = math.log %14 : vector<32x128xf32>
    %cst_9 = arith.constant -1.000000e+02 : f32
    %16 = vector.broadcast %cst_9 : f32 to vector<32x128xf32>
    %17 = arith.maximumf %15, %16 : vector<32x128xf32>
    %18 = arith.mulf %7, %12 : vector<32x128xf32>
    %cst_10 = arith.constant 1.000000e+00 : f32
    %19 = vector.broadcast %cst_10 : f32 to vector<32x128xf32>
    %20 = arith.subf %19, %7 : vector<32x128xf32>
    %21 = arith.mulf %20, %17 : vector<32x128xf32>
    %22 = arith.addf %18, %21 : vector<32x128xf32>
    %cst_11 = arith.constant 0.000000e+00 : f32
    %23 = vector.broadcast %cst_11 : f32 to vector<32x128xf32>
    %24 = arith.subf %23, %22 : vector<32x128xf32>
    %c0_12 = arith.constant 0 : index
    %c0_13 = arith.constant 0 : index
    %c0_14 = arith.constant 0 : index
    %25 = vector.load %arg8[%c0_12, %c0_13, %c0_14] : memref<1x8x128xf32, #tpu.memory_space<vmem>>, vector<1x8x128xf32>
    %26 = vector.shape_cast %25 : vector<1x8x128xf32> to vector<8x128xf32>
    %cst_15 = arith.constant 1.000000e+00 : f32
    %27 = vector.broadcast %cst_15 : f32 to vector<32x128xf32>
    %28 = arith.mulf %27, %24 : vector<32x128xf32>
    %29 = arith.mulf %28, %9 : vector<32x128xf32>
    %30 = vector.extract_strided_slice %29 {offsets = [0, 0], sizes = [8, 128], strides = [1, 1]} : vector<32x128xf32> to vector<8x128xf32>
    %31 = vector.extract_strided_slice %29 {offsets = [8, 0], sizes = [8, 128], strides = [1, 1]} : vector<32x128xf32> to vector<8x128xf32>
    %32 = arith.addf %30, %31 : vector<8x128xf32>
    %33 = vector.extract_strided_slice %29 {offsets = [16, 0], sizes = [8, 128], strides = [1, 1]} : vector<32x128xf32> to vector<8x128xf32>
    %34 = arith.addf %32, %33 : vector<8x128xf32>
    %35 = vector.extract_strided_slice %29 {offsets = [24, 0], sizes = [8, 128], strides = [1, 1]} : vector<32x128xf32> to vector<8x128xf32>
    %36 = arith.addf %34, %35 : vector<8x128xf32>
    %37 = arith.addf %26, %36 : vector<8x128xf32>
    %38 = arith.subf %6, %7 : vector<32x128xf32>
    %39 = arith.truncf %38 : vector<32x128xf32> to vector<32x128xbf16>
    %c16 = arith.constant 16 : index
    %c0_16 = arith.constant 0 : index
    %40 = vector.load %arg9[%c16, %c0_16] : memref<64x128xbf16, #tpu.memory_space<vmem>>, vector<32x128xbf16>
    tpu.vector_store %arg9[%c16, %c0_16], %39 {strides = array<i32>} : memref<64x128xbf16, #tpu.memory_space<vmem>>, vector<32x128xbf16>,
    %c0_17 = arith.constant 0 : index
    %c0_18 = arith.constant 0 : index
    %41 = vector.load %arg5[%c0_17, %c0_18] : memref<16x128xf32, #tpu.memory_space<vmem>>, vector<16x128xf32>
    %c0_19 = arith.constant 0 : index
    %c0_20 = arith.constant 0 : index
    %42 = vector.load %arg6[%c0_19, %c0_20] : memref<16x128xf32, #tpu.memory_space<vmem>>, vector<16x128xf32>
    %43 = arith.subf %41, %42 : vector<16x128xf32>
    %44 = arith.truncf %43 : vector<16x128xf32> to vector<16x128xbf16>
    %c48 = arith.constant 48 : index
    %c0_21 = arith.constant 0 : index
    %45 = vector.load %arg9[%c48, %c0_21] : memref<64x128xbf16, #tpu.memory_space<vmem>>, vector<16x128xbf16>
    tpu.vector_store %arg9[%c48, %c0_21], %44 {strides = array<i32>} : memref<64x128xbf16, #tpu.memory_space<vmem>>, vector<16x128xbf16>,
    %c0_22 = arith.constant 0 : index
    %c0_23 = arith.constant 0 : index
    %46 = vector.load %arg2[%c0_22, %c0_23] : memref<32x64xbf16, #tpu.memory_space<vmem>>, vector<32x64xbf16>
    %c0_24 = arith.constant 0 : index
    %c0_25 = arith.constant 0 : index
    %47 = vector.load %arg9[%c0_24, %c0_25] : memref<64x128xbf16, #tpu.memory_space<vmem>>, vector<64x128xbf16>
    %cst_26 = arith.constant dense<0.000000e+00> : vector<32x128xf32>
    %48 = tpu.matmul %46, %47, %cst_26 {dimension_numbers = #tpu.dot_dimension_numbers<[1], [0], [0], [1], [0, 0, 1, 1], [], []>} : vector<32x64xbf16>, vector<64x128xbf16>, vector<32x128xf32> -> vector<32x128xf32>
    %49 = arith.mulf %48, %48 : vector<32x128xf32>
    %cst_27 = arith.constant 0.00999999977 : f32
    %50 = vector.broadcast %cst_27 : f32 to vector<32x128xf32>
    %51 = arith.mulf %50, %49 : vector<32x128xf32>
    %52 = arith.mulf %51, %9 : vector<32x128xf32>
    %53 = vector.extract_strided_slice %52 {offsets = [0, 0], sizes = [8, 128], strides = [1, 1]} : vector<32x128xf32> to vector<8x128xf32>
    %54 = vector.extract_strided_slice %52 {offsets = [8, 0], sizes = [8, 128], strides = [1, 1]} : vector<32x128xf32> to vector<8x128xf32>
    %55 = arith.addf %53, %54 : vector<8x128xf32>
    %56 = vector.extract_strided_slice %52 {offsets = [16, 0], sizes = [8, 128], strides = [1, 1]} : vector<32x128xf32> to vector<8x128xf32>
    %57 = arith.addf %55, %56 : vector<8x128xf32>
    %58 = vector.extract_strided_slice %52 {offsets = [24, 0], sizes = [8, 128], strides = [1, 1]} : vector<32x128xf32> to vector<8x128xf32>
    %59 = arith.addf %57, %58 : vector<8x128xf32>
    %60 = arith.addf %37, %59 : vector<8x128xf32>
    %c0_28 = arith.constant 0 : index
    %c0_29 = arith.constant 0 : index
    %c0_30 = arith.constant 0 : index
    %61 = vector.load %arg8[%c0_28, %c0_29, %c0_30] : memref<1x8x128xf32, #tpu.memory_space<vmem>>, vector<1x8x128xf32>
    %62 = vector.shape_cast %61 : vector<1x8x128xf32> to vector<8x128xf32>
    %63 = vector.shape_cast %60 : vector<8x128xf32> to vector<1x8x128xf32>
    tpu.vector_store %arg8[%c0_28, %c0_29, %c0_30], %63 {strides = array<i32>} : memref<1x8x128xf32, #tpu.memory_space<vmem>>, vector<1x8x128xf32>,
    return
  }
  func.func @transform_0(%arg0: i32, %arg1: i32) -> (i32, i32) {
    %c0_i32 = arith.constant 0 : i32
    %c0_i32_0 = arith.constant 0 : i32
    %c0_i32_1 = arith.constant 0 : i32
    return %c0_i32, %c0_i32_0 : i32, i32
  }
  func.func @transform_1(%arg0: i32, %arg1: i32) -> (i32, i32) {
    %c0_i32 = arith.constant 0 : i32
    return %arg1, %arg0 : i32, i32
  }
  func.func @transform_2(%arg0: i32, %arg1: i32) -> (i32, i32) {
    %c0_i32 = arith.constant 0 : i32
    return %arg1, %arg0 : i32, i32
  }
  func.func @transform_3(%arg0: i32, %arg1: i32) -> (i32, i32) {
    %c1_i32 = arith.constant 1 : i32
    %0 = arith.addi %arg1, %c1_i32 : i32
    %c2_i32 = arith.constant 2 : i32
    %1 = arith.muli %0, %c2_i32 : i32
    %c0_i32 = arith.constant 0 : i32
    return %1, %arg0 : i32, i32
  }
  func.func @transform_4(%arg0: i32, %arg1: i32) -> (i32, i32) {
    %c1_i32 = arith.constant 1 : i32
    %0 = arith.addi %arg1, %c1_i32 : i32
    %c2_i32 = arith.constant 2 : i32
    %1 = arith.muli %0, %c2_i32 : i32
    %c0_i32 = arith.constant 0 : i32
    return %1, %arg0 : i32, i32
  }
  func.func @transform_5(%arg0: i32, %arg1: i32) -> (i32, i32) {
    %c0_i32 = arith.constant 0 : i32
    return %arg1, %arg0 : i32, i32
  }
  func.func @transform_6(%arg0: i32, %arg1: i32) -> (i32, i32, i32) {
    %c0_i32 = arith.constant 0 : i32
    %c0_i32_0 = arith.constant 0 : i32
    %c0_i32_1 = arith.constant 0 : i32
    return %arg0, %c0_i32, %c0_i32_0 : i32, i32, i32
  }
}

</mosaic_0001>

<llo_original>
// kernel: tpu_custom_call.1
$region0: #{tpu_custom_call.1}
  #allocation0 [shape = 'u32[]', space=smem, size = 0x4, offset = 0x4, fixed_abs, tag = 'smem constant byte address 0x4 - core index']
  #allocation1 [shape = 'u32[144,128]{1,0:T(1,128)}', space=vmem, size = 0x12000, scoped, tag = 'internal scratch']
  #allocation2 [shape = 'bf16[64,128]{1,0:T(8,128)(2,1)}', space=vmem, size = 0x4000, scoped, tag = 'scratch operand']
  %s0 = inlined_call_operand.hbm [shape: bf16[32,64], index: 0, kind: input, shape index: {}]
  %s1 = inlined_call_operand.hbm [shape: f32[48,128], index: 1, kind: input, shape index: {}]
  %s2 = inlined_call_operand.hbm [shape: f32[48,128], index: 2, kind: input, shape index: {}]
  %s3 = inlined_call_operand.hbm [shape: f32[48,128], index: 3, kind: input, shape index: {}]
  %s4 = inlined_call_operand.hbm [shape: f32[48,128], index: 4, kind: input, shape index: {}]
  %s5 = inlined_call_operand.vmem [shape: s8[32,128], index: 5, kind: input, shape index: {}]
  %s6 = inlined_call_operand.hbm [shape: f32[1,8,128], index: 6, kind: output, shape index: {}]
  %s7 = sld [smem:[#allocation0]]
  $region62: #{tpu_custom_call.1} parent=0
    _
  %s9 = ssub.s32 1, %s7
  %s10 = scalar_select 0, %s9, %s7
  $region1: #{tpu_custom_call.1} parent=0
    #allocation3 [shape = 'u8[8192]{0}', space=vmem, size = 0x2000, scoped, tag = 'input window, operand 0, single buffered']
    #allocation4 [shape = 's32[1]{0}', space=sflag, size = 0x4, scoped, tag = 'scoped memory for tpu_custom_call.1']
    #allocation5 [shape = 's32[1]{0}', space=sflag, size = 0x4, scoped, tag = 'scoped memory for tpu_custom_call.1']
    #allocation6 [shape = 'u8[16384]{0}', space=vmem, size = 0x4000, scoped, tag = 'input window, operand 1, single buffered']
    #allocation7 [shape = 's32[1]{0}', space=sflag, size = 0x4, scoped, tag = 'scoped memory for tpu_custom_call.1']
    #allocation8 [shape = 'u8[16384]{0}', space=vmem, size = 0x4000, scoped, tag = 'input window, operand 2, single buffered']
    #allocation9 [shape = 'u8[8192]{0}', space=vmem, size = 0x2000, scoped, tag = 'input window, operand 3, single buffered']
    #allocation10 [shape = 's32[1]{0}', space=sflag, size = 0x4, scoped, tag = 'scoped memory for tpu_custom_call.1']
    #allocation11 [shape = 'u8[8192]{0}', space=vmem, size = 0x2000, scoped, tag = 'input window, operand 4, single buffered']
    #allocation12 [shape = 'u8[4096]{0}', space=vmem, size = 0x1000, scoped, tag = 'output window, operand 0, single buffered']
    %11 = vsyncpa [#allocation4], 0
    %12 = vsyncpa [#allocation7], 0
    %13 = vsyncpa [#allocation10], 0
    %14 = vsyncpa [#allocation5], 0
    // Predicated region
    $region2: #{tpu_custom_call.1} parent=1 // pred_check
      _
    $region3: #{tpu_custom_call.1} parent=1 // pred_check_branch
      %16 = sbr.rel (0) target = $region5
    $region4: #{tpu_custom_call.1} parent=1 // pred_region
      %s18 = ssub.s32 256, 256
      %19 = vsyncadd [#allocation4], %s18
      %s20 = sshll.u32 [#allocation3], 4
      %s21 = int_to_ptr.vmem [resolvable:$true] %s20
      %26 = dma.hbm_to_vmem [thread:$0]  %s0, 256, %s21, [#allocation4], 64, 64, 4
    $region5: #{tpu_custom_call.1} parent=1 // pred_fallthru
      _
    // Predicated region
    $region6: #{tpu_custom_call.1} parent=1 // pred_check
      _
    $region7: #{tpu_custom_call.1} parent=1 // pred_check_branch
      %28 = sbr.rel (0) target = $region9
    $region8: #{tpu_custom_call.1} parent=1 // pred_region
      %s30 = ssub.s32 512, 512
      %31 = vsyncadd [#allocation7], %s30
      %s32 = sshll.u32 [#allocation6], 4
      %s33 = int_to_ptr.vmem [resolvable:$true] %s32
      %38 = dma.hbm_to_vmem [thread:$0]  %s1, 512, %s33, [#allocation7], 128, 128, 8
    $region9: #{tpu_custom_call.1} parent=1 // pred_fallthru
      _
    // Predicated region
    $region10: #{tpu_custom_call.1} parent=1 // pred_check
      _
    $region11: #{tpu_custom_call.1} parent=1 // pred_check_branch
      %40 = sbr.rel (0) target = $region13
    $region12: #{tpu_custom_call.1} parent=1 // pred_region
      %s42 = ssub.s32 512, 512
      %43 = vsyncadd [#allocation7], %s42
      %s44 = sshll.u32 [#allocation8], 4
      %s45 = int_to_ptr.vmem [resolvable:$true] %s44
      %50 = dma.hbm_to_vmem [thread:$0]  %s2, 512, %s45, [#allocation7], 128, 128, 8
    $region13: #{tpu_custom_call.1} parent=1 // pred_fallthru
      _
    // Predicated region
    $region14: #{tpu_custom_call.1} parent=1 // pred_check
      _
    $region15: #{tpu_custom_call.1} parent=1 // pred_check_branch
      %52 = sbr.rel (0) target = $region17
    $region16: #{tpu_custom_call.1} parent=1 // pred_region
      %s53 = sadd.s32 0, 1
      %s54 = smul.u32 %s53, 2
      %s55 = smul.u32 2, %s54
      %s57 = ssub.s32 256, 256
      %58 = vsyncadd [#allocation10], %s57
      %s59 = smul.addr %s55, 128
      %s60 = scalar_lea.hbm %s3, %s59
      %s61 = sshll.u32 [#allocation9], 4
      %s62 = int_to_ptr.vmem [resolvable:$true] %s61
      %67 = dma.hbm_to_vmem [thread:$0]  %s60, 256, %s62, [#allocation10], 128, 128, 8
    $region17: #{tpu_custom_call.1} parent=1 // pred_fallthru
      _
    // Predicated region
    $region18: #{tpu_custom_call.1} parent=1 // pred_check
      _
    $region19: #{tpu_custom_call.1} parent=1 // pred_check_branch
      %69 = sbr.rel (0) target = $region21
    $region20: #{tpu_custom_call.1} parent=1 // pred_region
      %s70 = sadd.s32 0, 1
      %s71 = smul.u32 %s70, 2
      %s72 = smul.u32 2, %s71
      %s74 = ssub.s32 256, 256
      %75 = vsyncadd [#allocation10], %s74
      %s76 = smul.addr %s72, 128
      %s77 = scalar_lea.hbm %s4, %s76
      %s78 = sshll.u32 [#allocation11], 4
      %s79 = int_to_ptr.vmem [resolvable:$true] %s78
      %84 = dma.hbm_to_vmem [thread:$0]  %s77, 256, %s79, [#allocation10], 128, 128, 8
    $region21: #{tpu_custom_call.1} parent=1 // pred_fallthru
      _
    // Predicated region
    $region22: #{tpu_custom_call.1} parent=1 // pred_check
      _
    $region23: #{tpu_custom_call.1} parent=1 // pred_check_branch
      %86 = sbr.rel (0) target = $region25
    $region24: #{tpu_custom_call.1} parent=1 // pred_region
      _
    $region25: #{tpu_custom_call.1} parent=1 // pred_fallthru
      _
    // Predicated region
    $region26: #{tpu_custom_call.1} parent=1 // pred_check
      _
    $region27: #{tpu_custom_call.1} parent=1 // pred_check_branch
      %88 = sbr.rel (0) target = $region29
    $region28: #{tpu_custom_call.1} parent=1 // pred_region
      %89 = dma.done [#allocation4], 256
    $region29: #{tpu_custom_call.1} parent=1 // pred_fallthru
      _
    // Predicated region
    $region30: #{tpu_custom_call.1} parent=1 // pred_check
      _
    $region31: #{tpu_custom_call.1} parent=1 // pred_check_branch
      %91 = sbr.rel (0) target = $region33
    $region32: #{tpu_custom_call.1} parent=1 // pred_region
      %92 = dma.done [#allocation7], 512
    $region33: #{tpu_custom_call.1} parent=1 // pred_fallthru
      _
    // Predicated region
    $region34: #{tpu_custom_call.1} parent=1 // pred_check
      _
    $region35: #{tpu_custom_call.1} parent=1 // pred_check_branch
      %94 = sbr.rel (0) target = $region37
    $region36: #{tpu_custom_call.1} parent=1 // pred_region
      %95 = dma.done [#allocation7], 512
    $region37: #{tpu_custom_call.1} parent=1 // pred_fallthru
      _
    // Predicated region
    $region38: #{tpu_custom_call.1} parent=1 // pred_check
      _
    $region39: #{tpu_custom_call.1} parent=1 // pred_check_branch
      %97 = sbr.rel (0) target = $region41
    $region40: #{tpu_custom_call.1} parent=1 // pred_region
      %98 = dma.done [#allocation10], 256
    $region41: #{tpu_custom_call.1} parent=1 // pred_fallthru
      _
    // Predicated region
    $region42: #{tpu_custom_call.1} parent=1 // pred_check
      _
    $region43: #{tpu_custom_call.1} parent=1 // pred_check_branch
      %100 = sbr.rel (0) target = $region45
    $region44: #{tpu_custom_call.1} parent=1 // pred_region
      %101 = dma.done [#allocation10], 256
    $region45: #{tpu_custom_call.1} parent=1 // pred_fallthru
      _
    %s102 = sadd.s32 0, 1
    %s103 = smul.u32 %s102, 2
    %s104 = smul.u32 2, %s103
    %s105 = sadd.s32 0, 1
    %s106 = smul.u32 %s105, 2
    %s107 = smul.u32 2, %s106
    %p109 = scmp.eq.s32.totalorder 0, 0
    // Predicated region
    $region46: #{tpu_custom_call.1} parent=1 // pred_check
      %p110 = pneg %p109
    $region47: #{tpu_custom_call.1} parent=1 // pred_check_branch
      %112 = sbr.rel (%p110) target = $region49
    $region48: #{tpu_custom_call.1} parent=1 // pred_region
      %113 = vst [vmem:[#allocation12] sm:$0xff] 0.0
      %114 = vst [vmem:[#allocation2] sm:$0xf] 0
      %115 = vst [vmem:[#allocation2 + $0x4] sm:$0xf] 0
    $region49: #{tpu_custom_call.1} parent=1 // pred_fallthru
      _
    %p116 = scmp.gt.s32.totalorder 0, 0
    // Predicated region
    $region50: #{tpu_custom_call.1} parent=1 // pred_check
      %p117 = pneg %p116
    $region51: #{tpu_custom_call.1} parent=1 // pred_check_branch
      %119 = sbr.rel (%p117) target = $region53
    $region52: #{tpu_custom_call.1} parent=1 // pred_region
      %v120 = vld [vmem:[#allocation2 + $0x10] sm:$0xf]
      %v121 = vld [vmem:[#allocation2 + $0x14] sm:$0xf]
      %122 = vst [vmem:[#allocation2] sm:$0xf] %v120
      %123 = vst [vmem:[#allocation2 + $0x4] sm:$0xf] %v121
    $region53: #{tpu_custom_call.1} parent=1 // pred_fallthru
      _
    %v124 = vld [vmem:[#allocation6] sm:$0xff]
    %v125 = vld [vmem:[#allocation6 + $0x8] sm:$0xff]
    %v126 = vld [vmem:[#allocation6 + $0x10] sm:$0xff]
    %v127 = vld [vmem:[#allocation6 + $0x18] sm:$0xff]
    %v128 = vld [vmem:[#allocation8] sm:$0xff]
    %v129 = vld [vmem:[#allocation8 + $0x8] sm:$0xff]
    %v130 = vld [vmem:[#allocation8 + $0x10] sm:$0xff]
    %v131 = vld [vmem:[#allocation8 + $0x18] sm:$0xff]
    %v132 = vld [vmem:[%s5] sm:$0xff]
    %v133 = vunpack.c.0.s8 %v132
    %v134 = vunpack.c.1.s8 %v132
    %v135 = vunpack.c.2.s8 %v132
    %v136 = vunpack.c.3.s8 %v132
    %v137 = vcvt.s32.f32 %v133
    %v138 = vcvt.s32.f32 %v134
    %v139 = vcvt.s32.f32 %v135
    %v140 = vcvt.s32.f32 %v136
    %v141 = vlog2.pop %v124
    %v142 = vmul.f32 %v141, 0.6931472
    %v143 = vlog2.pop %v125
    %v144 = vmul.f32 %v143, 0.6931472
    %v145 = vlog2.pop %v126
    %v146 = vmul.f32 %v145, 0.6931472
    %v147 = vlog2.pop %v127
    %v148 = vmul.f32 %v147, 0.6931472
    %v149 = vmax.f32 %v142, -100.0
    %v150 = vmax.f32 %v144, -100.0
    %v151 = vmax.f32 %v146, -100.0
    %v152 = vmax.f32 %v148, -100.0
    %v153 = vsub.f32 1.0, %v124
    %v154 = vsub.f32 1.0, %v125
    %v155 = vsub.f32 1.0, %v126
    %v156 = vsub.f32 1.0, %v127
    %v157 = vlog2.pop %v153
    %v158 = vmul.f32 %v157, 0.6931472
    %v159 = vlog2.pop %v154
    %v160 = vmul.f32 %v159, 0.6931472
    %v161 = vlog2.pop %v155
    %v162 = vmul.f32 %v161, 0.6931472
    %v163 = vlog2.pop %v156
    %v164 = vmul.f32 %v163, 0.6931472
    %v165 = vmax.f32 %v158, -100.0
    %v166 = vmax.f32 %v160, -100.0
    %v167 = vmax.f32 %v162, -100.0
    %v168 = vmax.f32 %v164, -100.0
    %v169 = vmul.f32 %v128, %v149
    %v170 = vmul.f32 %v129, %v150
    %v171 = vmul.f32 %v130, %v151
    %v172 = vmul.f32 %v131, %v152
    %v173 = vsub.f32 1.0, %v128
    %v174 = vsub.f32 1.0, %v129
    %v175 = vsub.f32 1.0, %v130
    %v176 = vsub.f32 1.0, %v131
    %v177 = vmul.f32 %v173, %v165
    %v178 = vmul.f32 %v174, %v166
    %v179 = vmul.f32 %v175, %v167
    %v180 = vmul.f32 %v176, %v168
    %v181 = vadd.f32 %v169, %v177
    %v182 = vadd.f32 %v170, %v178
    %v183 = vadd.f32 %v171, %v179
    %v184 = vadd.f32 %v172, %v180
    %v185 = vsub.f32 0.0, %v181
    %v186 = vsub.f32 0.0, %v182
    %v187 = vsub.f32 0.0, %v183
    %v188 = vsub.f32 0.0, %v184
    %v189 = vld [vmem:[#allocation12] sm:$0xff]
    %v190 = vmul.f32 %v185, %v137
    %v191 = vmul.f32 %v186, %v138
    %v192 = vmul.f32 %v187, %v139
    %v193 = vmul.f32 %v188, %v140
    %v194 = vadd.f32 %v190, %v191
    %v195 = vadd.f32 %v194, %v192
    %v196 = vadd.f32 %v195, %v193
    %v197 = vadd.f32 %v189, %v196
    %v198 = vsub.f32 %v124, %v128
    %v199 = vsub.f32 %v125, %v129
    %v200 = vsub.f32 %v126, %v130
    %v201 = vsub.f32 %v127, %v131
    %v202 = vpack.c.bf16 %v199, %v198
    %v203 = vpack.c.bf16 %v201, %v200
    %v206 = vunpack.c.l.b16 %v202
    %v207 = vunpack.c.h.b16 %v202
    %v208 = vunpack.c.l.b16 %v203
    %v209 = vunpack.c.h.b16 %v203
    %v210 = vpack.c.b16 %v206, %v206
    %v211 = vpack.c.b16 %v207, %v207
    %v212 = vpack.c.b16 %v208, %v208
    %v213 = vpack.c.b16 %v209, %v209
    %218 = vst [vmem:[#allocation2 + $0x8] sm:$0xf] %v210
    %219 = vst [vmem:[#allocation2 + $0xc] sm:$0xf] %v211
    %220 = vst [vmem:[#allocation2 + $0x10] sm:$0xf] %v212
    %221 = vst [vmem:[#allocation2 + $0x14] sm:$0xf] %v213
    %v222 = vld [vmem:[#allocation9] sm:$0xff]
    %v223 = vld [vmem:[#allocation9 + $0x8] sm:$0xff]
    %v224 = vld [vmem:[#allocation11] sm:$0xff]
    %v225 = vld [vmem:[#allocation11 + $0x8] sm:$0xff]
    %v226 = vsub.f32 %v222, %v224
    %v227 = vsub.f32 %v223, %v225
    %v228 = vpack.c.bf16 %v227, %v226
    %v230 = vunpack.c.l.b16 %v228
    %v231 = vunpack.c.h.b16 %v228
    %v232 = vpack.c.b16 %v230, %v230
    %v233 = vpack.c.b16 %v231, %v231
    %236 = vst [vmem:[#allocation2 + $0x18] sm:$0xf] %v232
    %237 = vst [vmem:[#allocation2 + $0x1c] sm:$0xf] %v233
    %v238 = vld [vmem:[#allocation3] sm:$0xf]
    %v239 = vld [vmem:[#allocation3 + $0x4] sm:$0xf]
    %v240 = vld [vmem:[#allocation3 + $0x8] sm:$0xf]
    %v241 = vld [vmem:[#allocation3 + $0xc] sm:$0xf]
    %v242 = vld [vmem:[#allocation2] sm:$0xf]
    %v243 = vld [vmem:[#allocation2 + $0x4] sm:$0xf]
    %v244 = vld [vmem:[#allocation2 + $0x8] sm:$0xf]
    %v245 = vld [vmem:[#allocation2 + $0xc] sm:$0xf]
    %v246 = vld [vmem:[#allocation2 + $0x10] sm:$0xf]
    %v247 = vld [vmem:[#allocation2 + $0x14] sm:$0xf]
    %v248 = vld [vmem:[#allocation2 + $0x18] sm:$0xf]
    %v249 = vld [vmem:[#allocation2 + $0x1c] sm:$0xf]
    %v254 = vunpack.c.l.b16 %v238
    %v255 = vunpack.c.l.b16 %v239
    %v256 = vunpack.c.l.b16 %v240
    %v257 = vunpack.c.l.b16 %v241
    %v258 = vpack.c.b16 %v255, %v254
    %v259 = vpack.c.b16 %v257, %v256
    %v268 = vunpack.c.l.b16 %v242
    %v269 = vunpack.c.l.b16 %v243
    %v270 = vunpack.c.l.b16 %v244
    %v271 = vunpack.c.l.b16 %v245
    %v272 = vunpack.c.l.b16 %v246
    %v273 = vunpack.c.l.b16 %v247
    %v274 = vunpack.c.l.b16 %v248
    %v275 = vunpack.c.l.b16 %v249
    %v276 = vpack.c.b16 %v269, %v268
    %v277 = vpack.c.b16 %v271, %v270
    %v278 = vpack.c.b16 %v273, %v272
    %v279 = vpack.c.b16 %v275, %v274
    %vm284 = vcmask 523264
    %v286 = vsel %vm284, %v258, 0
    %v289 = vsel %vm284, %v259, 0
    %291 = vmatprep.subr.bf16.mxu0 0
    %292 = vmatpush1.bf16.msra.mxu0 0
    %293 = vmatprep.subr.bf16.mxu0 0
    %294 = vmatpush1.bf16.msra.mxu0 0
    %295 = vmatprep.subr.bf16.mxu0 0
    %296 = vmatpush1.bf16.msra.mxu0 0
    %297 = vmatprep.subr.bf16.mxu0 0
    %298 = vmatpush1.bf16.msra.mxu0 0
    %299 = vmatprep.subr.bf16.mxu0 0
    %300 = vmatpush1.bf16.msra.mxu0 %v279
    %301 = vmatprep.subr.bf16.mxu0 0
    %302 = vmatpush1.bf16.msra.mxu0 %v278
    %303 = vmatprep.subr.bf16.mxu0 0
    %304 = vmatpush1.bf16.msra.mxu0 %v277
    %305 = vmatprep.subr.bf16.mxu0 0
    %306 = vmatpush1.bf16.msra.mxu0 %v276
    %307 = vmatprep.subr.bf16.mxu0 0
    %308 = vmatpush2.bf16.msra.mxu0 0
    %309 = vmatprep.subr.bf16.mxu0 0
    %310 = vmatpush2.bf16.msra.mxu0 0
    %311 = vmatprep.subr.bf16.mxu0 0
    %312 = vmatpush2.bf16.msra.mxu0 0
    %313 = vmatprep.subr.bf16.mxu0 0
    %314 = vmatpush2.bf16.msra.mxu0 0
    %315 = vmatprep.subr.bf16.mxu0 0
    %316 = vmatpush2.bf16.msra.mxu0 0
    %317 = vmatprep.subr.bf16.mxu0 0
    %318 = vmatpush2.bf16.msra.mxu0 0
    %319 = vmatprep.subr.bf16.mxu0 0
    %320 = vmatpush2.bf16.msra.mxu0 0
    %321 = vmatprep.subr.bf16.mxu0 0
    %322 = vmatpush2.bf16.msra.mxu0 0
    %323 = vmatprep.mubr.bf16.mxu0 0
    %324 = vmatmul.mubr.bf16.gmra.mxu0 %v286
    %v325 = vpop.f32.mrf.mxu0
    %v326 = vadd.f32 0.0, %v325
    %v327 = vpop.f32.mrf.mxu0
    %v328 = vpop.f32.mrf.mxu0
    %v329 = vadd.f32 0.0, %v328
    %v330 = vpop.f32.mrf.mxu0
    %331 = vmatprep.mubr.bf16.mxu0 0
    %332 = vmatmul.mubr.bf16.gmra.mxu0 %v289
    %v333 = vpop.f32.mrf.mxu0
    %v334 = vadd.f32 0.0, %v333
    %v335 = vpop.f32.mrf.mxu0
    %v336 = vpop.f32.mrf.mxu0
    %v337 = vadd.f32 0.0, %v336
    %v338 = vpop.f32.mrf.mxu0
    %339 = vdwg.mxu0
    %v340 = vmul.f32 %v326, %v326
    %v341 = vmul.f32 %v329, %v329
    %v342 = vmul.f32 %v334, %v334
    %v343 = vmul.f32 %v337, %v337
    %v344 = vmul.f32 %v340, 0.01
    %v345 = vmul.f32 %v341, 0.01
    %v346 = vmul.f32 %v342, 0.01
    %v347 = vmul.f32 %v343, 0.01
    %v348 = vmul.f32 %v344, %v137
    %v349 = vmul.f32 %v345, %v138
    %v350 = vmul.f32 %v346, %v139
    %v351 = vmul.f32 %v347, %v140
    %v352 = vadd.f32 %v348, %v349
    %v353 = vadd.f32 %v352, %v350
    %v354 = vadd.f32 %v353, %v351
    %v355 = vadd.f32 %v197, %v354
    %356 = vst [vmem:[#allocation12] sm:$0xff] %v355
    // Predicated region
    $region54: #{tpu_custom_call.1} parent=1 // pred_check
      _
    $region55: #{tpu_custom_call.1} parent=1 // pred_check_branch
      %358 = sbr.rel (0) target = $region57
    $region56: #{tpu_custom_call.1} parent=1 // pred_region
      %s360 = ssub.s32 128, 128
      %361 = vsyncadd [#allocation5], %s360
      %s363 = sshll.u32 [#allocation12], 4
      %s364 = int_to_ptr.vmem [resolvable:$true] %s363
      %366 = dma.vmem_to_hbm [thread:$0]  %s364, 128, %s6, [#allocation5]
    $region57: #{tpu_custom_call.1} parent=1 // pred_fallthru
      _
    // Predicated region
    $region58: #{tpu_custom_call.1} parent=1 // pred_check
      _
    $region59: #{tpu_custom_call.1} parent=1 // pred_check_branch
      %368 = sbr.rel (0) target = $region61
    $region60: #{tpu_custom_call.1} parent=1 // pred_region
      %369 = dma.done [#allocation5], 128
    $region61: #{tpu_custom_call.1} parent=1 // pred_fallthru
      _
    %370 = vsyncpa [#allocation4], 1
    %371 = vsyncpa [#allocation7], 1
    %372 = vsyncpa [#allocation10], 1
    %373 = vsyncpa [#allocation5], 1

</llo_original>
